<compile_context>
chip_gen: v5e
topology: v5e:2x2
jax: 0.10.0
libtpu: 0.0.40
codegen_flags: <defaults>
</compile_context>

<pallas_src>
import jax
import jax.numpy as jnp
from jax.experimental import pallas as pl
from jax.experimental.pallas import tpu as pltpu


def _round_up(x, m):
    return (x + m - 1) // m * m


def _attention_kernel(xc_ref, xo_ref, w1a_ref, w1b_ref, w11_ref, w2_ref, o_ref):
    # xc_ref:  [TB, E]        center embeddings tile (f32)
    # xo_ref:  [TB, E]        offset embeddings tile (f32)
    # w1a_ref: [E,  Mp]       top half of atten_mats1   (bf16, N zero-padded)
    # w1b_ref: [E,  Mp]       bottom half of atten_mats1(bf16, N zero-padded)
    # w11_ref: [Mp, Mp]       atten_mats1_1             (bf16, zero-padded)
    # w2_ref:  [Mp, Mp]       atten_mats2               (bf16, zero-padded)
    # o_ref:   [TB, Mp]       output tile (f32, lane-dense)
    xc = xc_ref[...].astype(jnp.bfloat16)
    xo = xo_ref[...].astype(jnp.bfloat16)

    # relu(cat(xc, xo) @ W1) == relu(xc @ W1a + xo @ W1b)  (fused concat)
    t2 = jnp.dot(xc, w1a_ref[...], preferred_element_type=jnp.float32)
    t2 = t2 + jnp.dot(xo, w1b_ref[...], preferred_element_type=jnp.float32)
    t2 = jnp.maximum(t2, 0.0).astype(jnp.bfloat16)

    t2 = jnp.maximum(
        jnp.dot(t2, w11_ref[...], preferred_element_type=jnp.float32), 0.0
    ).astype(jnp.bfloat16)

    o_ref[...] = jnp.dot(t2, w2_ref[...], preferred_element_type=jnp.float32)


def attention_forward(center_embed, offset_embed, atten_mats1, atten_mats1_1,
                      atten_mats2, *, block_b=256):
    """Fused Pallas forward for Attention (center_use_offset, bn='no', nat=2, 'ele')."""
    B, E = center_embed.shape
    M = atten_mats2.shape[1]
    LANE = 128
    M_pad = _round_up(max(M, LANE), LANE)   # lane-dense hidden/output width

    # Split atten_mats1 into center/offset halves (fuses the torch.cat), pad the
    # output-feature axis to M_pad with zeros, and cast weights to bf16.
    def _prep(w, rows):
        wp = jnp.zeros((rows, M_pad), dtype=jnp.bfloat16)
        return wp.at[: w.shape[0], : w.shape[1]].set(w.astype(jnp.bfloat16))

    w1a = _prep(atten_mats1[:E], E)          # [E,  M_pad]
    w1b = _prep(atten_mats1[E:], E)          # [E,  M_pad]
    w11 = _prep(atten_mats1_1, M_pad)        # [M_pad, M_pad] (extra rows are zero)
    w2 = _prep(atten_mats2, M_pad)           # [M_pad, M_pad]

    # Batch tile: multiple of 8 (f32 sublane); pad B so the grid divides evenly.
    TB = min(block_b, _round_up(B, 8))
    B_pad = _round_up(B, TB)
    if B_pad != B:
        pad = ((0, B_pad - B), (0, 0))
        center_embed = jnp.pad(center_embed, pad)
        offset_embed = jnp.pad(offset_embed, pad)

    grid = (B_pad // TB,)
    out = pl.pallas_call(
        _attention_kernel,
        out_shape=jax.ShapeDtypeStruct((B_pad, M_pad), jnp.float32),
        grid_spec=pltpu.PrefetchScalarGridSpec(
            num_scalar_prefetch=0,
            grid=grid,
            in_specs=[
                pl.BlockSpec((TB, E), lambda i: (i, 0)),        # center tile
                pl.BlockSpec((TB, E), lambda i: (i, 0)),        # offset tile
                pl.BlockSpec((E, M_pad), lambda i: (0, 0)),     # W1a (resident)
                pl.BlockSpec((E, M_pad), lambda i: (0, 0)),     # W1b (resident)
                pl.BlockSpec((M_pad, M_pad), lambda i: (0, 0)), # W1_1 (resident)
                pl.BlockSpec((M_pad, M_pad), lambda i: (0, 0)), # W2 (resident)
            ],
            out_specs=pl.BlockSpec((TB, M_pad), lambda i: (i, 0)),
        ),
        compiler_params=pltpu.CompilerParams(
            dimension_semantics=("parallel",),
        ),
    )(center_embed, offset_embed, w1a, w1b, w11, w2)

    return out[:B, :M]


def _xavier_uniform(key, shape, dtype=jnp.float32):
    # matches torch.nn.init.xavier_uniform_ for a 2-D weight
    fan_in, fan_out = shape[0], shape[1]
    limit = (6.0 / (fan_in + fan_out)) ** 0.5
    return jax.random.uniform(key, shape, dtype=dtype, minval=-limit, maxval=limit)


if __name__ == "__main__":
    # small shapes consistent with the module
    batch = 8          # number of (sub)queries being attended over
    expand_dims = 32   # entity embedding dim
    mode_dims = 32     # attention hidden dim

    key = jax.random.PRNGKey(0)
    k_c, k_o, k_w1, k_w11, k_w2 = jax.random.split(key, 5)

    center_embed = jax.random.normal(k_c, (batch, expand_dims), dtype=jnp.float32)
    offset_embed = jax.random.normal(k_o, (batch, expand_dims), dtype=jnp.float32)

    # parameters (deterministic xavier-uniform init, shapes per __init__)
    atten_mats1 = _xavier_uniform(k_w1, (expand_dims * 2, mode_dims))   # center_use_offset
    atten_mats1_1 = _xavier_uniform(k_w11, (mode_dims, mode_dims))      # nat >= 2
    atten_mats2 = _xavier_uniform(k_w2, (mode_dims, mode_dims))         # att_type == 'ele'

    out = attention_forward(center_embed, offset_embed, atten_mats1,
                            atten_mats1_1, atten_mats2)
    out = jax.block_until_ready(out)
    assert out.shape == (batch, mode_dims)

    # Reference mirroring the kernel math (bf16 operands, f32 accumulation).
    xc = center_embed.astype(jnp.bfloat16)
    xo = offset_embed.astype(jnp.bfloat16)
    t2 = (jnp.dot(xc, atten_mats1[:expand_dims].astype(jnp.bfloat16),
                  preferred_element_type=jnp.float32)
          + jnp.dot(xo, atten_mats1[expand_dims:].astype(jnp.bfloat16),
                    preferred_element_type=jnp.float32))
    t2 = jnp.maximum(t2, 0.0).astype(jnp.bfloat16)
    t2 = jnp.maximum(
        jnp.dot(t2, atten_mats1_1.astype(jnp.bfloat16),
                preferred_element_type=jnp.float32), 0.0
    ).astype(jnp.bfloat16)
    ref = jnp.dot(t2, atten_mats2.astype(jnp.bfloat16),
                  preferred_element_type=jnp.float32)

    assert jnp.allclose(out, ref, atol=2e-3, rtol=2e-3), (
        float(jnp.max(jnp.abs(out - ref))))

    print("KERNEL_OK")
</pallas_src>

<mosaic_0001>
module attributes {stable_mosaic.version = 11 : i64} {
  func.func @_attention_kernel(%arg0: i32, %arg1: memref<8x32xf32, #tpu.memory_space<vmem>>, %arg2: memref<8x32xf32, #tpu.memory_space<vmem>>, %arg3: memref<32x128xbf16, #tpu.memory_space<vmem>>, %arg4: memref<32x128xbf16, #tpu.memory_space<vmem>>, %arg5: memref<128x128xbf16, #tpu.memory_space<vmem>>, %arg6: memref<128x128xbf16, #tpu.memory_space<vmem>>, %arg7: memref<8x128xf32, #tpu.memory_space<vmem>>) attributes {dimension_semantics = [#tpu.dimension_semantics<parallel>], iteration_bounds = array<i64: 1>, scalar_prefetch = 0 : i64, scratch_operands = 0 : i64, tpu.core_type = #tpu.core_type<tc>, window_params = [{transform_indices = @transform_0, window_bounds = array<i64: 8, 32>}, {transform_indices = @transform_1, window_bounds = array<i64: 8, 32>}, {pipeline_mode = #tpu.pipeline_mode<synchronous>, transform_indices = @transform_2, window_bounds = array<i64: 32, 128>}, {pipeline_mode = #tpu.pipeline_mode<synchronous>, transform_indices = @transform_3, window_bounds = array<i64: 32, 128>}, {pipeline_mode = #tpu.pipeline_mode<synchronous>, transform_indices = @transform_4, window_bounds = array<i64: 128, 128>}, {pipeline_mode = #tpu.pipeline_mode<synchronous>, transform_indices = @transform_5, window_bounds = array<i64: 128, 128>}, {transform_indices = @transform_6, window_bounds = array<i64: 8, 128>}]} {
    %c0 = arith.constant 0 : index
    %c0_0 = arith.constant 0 : index
    %0 = vector.load %arg1[%c0, %c0_0] : memref<8x32xf32, #tpu.memory_space<vmem>>, vector<8x32xf32>
    %1 = arith.truncf %0 : vector<8x32xf32> to vector<8x32xbf16>
    %c0_1 = arith.constant 0 : index
    %c0_2 = arith.constant 0 : index
    %2 = vector.load %arg2[%c0_1, %c0_2] : memref<8x32xf32, #tpu.memory_space<vmem>>, vector<8x32xf32>
    %3 = arith.truncf %2 : vector<8x32xf32> to vector<8x32xbf16>
    %c0_3 = arith.constant 0 : index
    %c0_4 = arith.constant 0 : index
    %4 = vector.load %arg3[%c0_3, %c0_4] : memref<32x128xbf16, #tpu.memory_space<vmem>>, vector<32x128xbf16>
    %cst = arith.constant dense<0.000000e+00> : vector<8x128xf32>
    %5 = tpu.matmul %1, %4, %cst {dimension_numbers = #tpu.dot_dimension_numbers<[1], [0], [0], [1], [0, 0, 1, 1], [], []>} : vector<8x32xbf16>, vector<32x128xbf16>, vector<8x128xf32> -> vector<8x128xf32>
    %c0_5 = arith.constant 0 : index
    %c0_6 = arith.constant 0 : index
    %6 = vector.load %arg4[%c0_5, %c0_6] : memref<32x128xbf16, #tpu.memory_space<vmem>>, vector<32x128xbf16>
    %cst_7 = arith.constant dense<0.000000e+00> : vector<8x128xf32>
    %7 = tpu.matmul %3, %6, %cst_7 {dimension_numbers = #tpu.dot_dimension_numbers<[1], [0], [0], [1], [0, 0, 1, 1], [], []>} : vector<8x32xbf16>, vector<32x128xbf16>, vector<8x128xf32> -> vector<8x128xf32>
    %8 = arith.addf %5, %7 : vector<8x128xf32>
    %cst_8 = arith.constant 0.000000e+00 : f32
    %9 = vector.broadcast %cst_8 : f32 to vector<8x128xf32>
    %10 = arith.maximumf %8, %9 : vector<8x128xf32>
    %11 = arith.truncf %10 : vector<8x128xf32> to vector<8x128xbf16>
    %c0_9 = arith.constant 0 : index
    %c0_10 = arith.constant 0 : index
    %12 = vector.load %arg5[%c0_9, %c0_10] : memref<128x128xbf16, #tpu.memory_space<vmem>>, vector<128x128xbf16>
    %cst_11 = arith.constant dense<0.000000e+00> : vector<8x128xf32>
    %13 = tpu.matmul %11, %12, %cst_11 {dimension_numbers = #tpu.dot_dimension_numbers<[1], [0], [0], [1], [0, 0, 1, 1], [], []>} : vector<8x128xbf16>, vector<128x128xbf16>, vector<8x128xf32> -> vector<8x128xf32>
    %cst_12 = arith.constant 0.000000e+00 : f32
    %14 = vector.broadcast %cst_12 : f32 to vector<8x128xf32>
    %15 = arith.maximumf %13, %14 : vector<8x128xf32>
    %16 = arith.truncf %15 : vector<8x128xf32> to vector<8x128xbf16>
    %c0_13 = arith.constant 0 : index
    %c0_14 = arith.constant 0 : index
    %17 = vector.load %arg6[%c0_13, %c0_14] : memref<128x128xbf16, #tpu.memory_space<vmem>>, vector<128x128xbf16>
    %cst_15 = arith.constant dense<0.000000e+00> : vector<8x128xf32>
    %18 = tpu.matmul %16, %17, %cst_15 {dimension_numbers = #tpu.dot_dimension_numbers<[1], [0], [0], [1], [0, 0, 1, 1], [], []>} : vector<8x128xbf16>, vector<128x128xbf16>, vector<8x128xf32> -> vector<8x128xf32>
    %c0_16 = arith.constant 0 : index
    %c0_17 = arith.constant 0 : index
    %19 = vector.load %arg7[%c0_16, %c0_17] : memref<8x128xf32, #tpu.memory_space<vmem>>, vector<8x128xf32>
    tpu.vector_store %arg7[%c0_16, %c0_17], %18 {strides = array<i32>} : memref<8x128xf32, #tpu.memory_space<vmem>>, vector<8x128xf32>,
    return
  }
  func.func @transform_0(%arg0: i32) -> (i32, i32) {
    %c0_i32 = arith.constant 0 : i32
    %c0_i32_0 = arith.constant 0 : i32
    return %arg0, %c0_i32 : i32, i32
  }
  func.func @transform_1(%arg0: i32) -> (i32, i32) {
    %c0_i32 = arith.constant 0 : i32
    %c0_i32_0 = arith.constant 0 : i32
    return %arg0, %c0_i32 : i32, i32
  }
  func.func @transform_2(%arg0: i32) -> (i32, i32) {
    %c0_i32 = arith.constant 0 : i32
    %c0_i32_0 = arith.constant 0 : i32
    %c0_i32_1 = arith.constant 0 : i32
    return %c0_i32, %c0_i32_0 : i32, i32
  }
  func.func @transform_3(%arg0: i32) -> (i32, i32) {
    %c0_i32 = arith.constant 0 : i32
    %c0_i32_0 = arith.constant 0 : i32
    %c0_i32_1 = arith.constant 0 : i32
    return %c0_i32, %c0_i32_0 : i32, i32
  }
  func.func @transform_4(%arg0: i32) -> (i32, i32) {
    %c0_i32 = arith.constant 0 : i32
    %c0_i32_0 = arith.constant 0 : i32
    %c0_i32_1 = arith.constant 0 : i32
    return %c0_i32, %c0_i32_0 : i32, i32
  }
  func.func @transform_5(%arg0: i32) -> (i32, i32) {
    %c0_i32 = arith.constant 0 : i32
    %c0_i32_0 = arith.constant 0 : i32
    %c0_i32_1 = arith.constant 0 : i32
    return %c0_i32, %c0_i32_0 : i32, i32
  }
  func.func @transform_6(%arg0: i32) -> (i32, i32) {
    %c0_i32 = arith.constant 0 : i32
    %c0_i32_0 = arith.constant 0 : i32
    return %arg0, %c0_i32 : i32, i32
  }
}

</mosaic_0001>

<llo_original>
// kernel: tpu_custom_call.1
$region0: #{tpu_custom_call.1}
  #allocation0 [shape = 'u32[]', space=smem, size = 0x4, offset = 0x4, fixed_abs, tag = 'smem constant byte address 0x4 - core index']
  #allocation1 [shape = 'u32[72,128]{1,0:T(1,128)}', space=vmem, size = 0x9000, scoped, tag = 'internal scratch']
  %s0 = inlined_call_operand.hbm [shape: f32[8,32], index: 0, kind: input, shape index: {}]
  %s1 = inlined_call_operand.hbm [shape: f32[8,32], index: 1, kind: input, shape index: {}]
  %s2 = inlined_call_operand.hbm [shape: bf16[32,128], index: 2, kind: input, shape index: {}]
  %s3 = inlined_call_operand.hbm [shape: bf16[32,128], index: 3, kind: input, shape index: {}]
  %s4 = inlined_call_operand.hbm [shape: bf16[128,128], index: 4, kind: input, shape index: {}]
  %s5 = inlined_call_operand.hbm [shape: bf16[128,128], index: 5, kind: input, shape index: {}]
  %s6 = inlined_call_operand.hbm [shape: f32[8,128], index: 6, kind: output, shape index: {}]
  %s7 = sld [smem:[#allocation0]]
  $region58: #{tpu_custom_call.1} parent=0
    _
  %s9 = ssub.s32 1, %s7
  %s10 = scalar_select 0, %s9, %s7
  $region1: #{tpu_custom_call.1} parent=0
    #allocation2 [shape = 'u8[4096]{0}', space=vmem, size = 0x1000, scoped, tag = 'input window, operand 0, single buffered']
    #allocation3 [shape = 's32[1]{0}', space=sflag, size = 0x4, scoped, tag = 'scoped memory for tpu_custom_call.1']
    #allocation4 [shape = 's32[1]{0}', space=sflag, size = 0x4, scoped, tag = 'scoped memory for tpu_custom_call.1']
    #allocation5 [shape = 'u8[4096]{0}', space=vmem, size = 0x1000, scoped, tag = 'input window, operand 1, single buffered']
    #allocation6 [shape = 's32[1]{0}', space=sflag, size = 0x4, scoped, tag = 'scoped memory for tpu_custom_call.1']
    #allocation7 [shape = 'u8[8192]{0}', space=vmem, size = 0x2000, scoped, tag = 'input window, operand 2, single buffered']
    #allocation8 [shape = 'u8[8192]{0}', space=vmem, size = 0x2000, scoped, tag = 'input window, operand 3, single buffered']
    #allocation9 [shape = 's32[1]{0}', space=sflag, size = 0x4, scoped, tag = 'scoped memory for tpu_custom_call.1']
    #allocation10 [shape = 'u8[32768]{0}', space=vmem, size = 0x8000, scoped, tag = 'input window, operand 4, single buffered']
    #allocation11 [shape = 'u8[32768]{0}', space=vmem, size = 0x8000, scoped, tag = 'input window, operand 5, single buffered']
    #allocation12 [shape = 's32[1]{0}', space=sflag, size = 0x4, scoped, tag = 'scoped memory for tpu_custom_call.1']
    #allocation13 [shape = 'u8[4096]{0}', space=vmem, size = 0x1000, scoped, tag = 'output window, operand 0, single buffered']
    %11 = vsyncpa [#allocation3], 0
    %12 = vsyncpa [#allocation6], 0
    %13 = vsyncpa [#allocation9], 0
    %14 = vsyncpa [#allocation12], 0
    %15 = vsyncpa [#allocation4], 0
    // Predicated region
    $region2: #{tpu_custom_call.1} parent=1 // pred_check
      _
    $region3: #{tpu_custom_call.1} parent=1 // pred_check_branch
      %17 = sbr.rel (0) target = $region5
    $region4: #{tpu_custom_call.1} parent=1 // pred_region
      %19 = vsyncadd [#allocation3], 0
      %s21 = sshll.u32 %s0, 4
      %s22 = int_to_ptr.hbm [resolvable:$true] %s21
      %s23 = sshll.u32 [#allocation2], 4
      %s24 = int_to_ptr.vmem [resolvable:$true] %s23
      %26 = dma.hbm_to_vmem [thread:$0]  %s22, 128, %s24, [#allocation3]
    $region5: #{tpu_custom_call.1} parent=1 // pred_fallthru
      _
    // Predicated region
    $region6: #{tpu_custom_call.1} parent=1 // pred_check
      _
    $region7: #{tpu_custom_call.1} parent=1 // pred_check_branch
      %28 = sbr.rel (0) target = $region9
    $region8: #{tpu_custom_call.1} parent=1 // pred_region
      %30 = vsyncadd [#allocation6], 0
      %s32 = sshll.u32 %s1, 4
      %s33 = int_to_ptr.hbm [resolvable:$true] %s32
      %s34 = sshll.u32 [#allocation5], 4
      %s35 = int_to_ptr.vmem [resolvable:$true] %s34
      %37 = dma.hbm_to_vmem [thread:$0]  %s33, 128, %s35, [#allocation6]
    $region9: #{tpu_custom_call.1} parent=1 // pred_fallthru
      _
    // Predicated region
    $region10: #{tpu_custom_call.1} parent=1 // pred_check
      _
    $region11: #{tpu_custom_call.1} parent=1 // pred_check_branch
      %39 = sbr.rel (0) target = $region13
    $region12: #{tpu_custom_call.1} parent=1 // pred_region
      %41 = vsyncadd [#allocation6], 0
      %s42 = sshll.u32 %s2, 4
      %s43 = int_to_ptr.hbm [resolvable:$true] %s42
      %s44 = sshll.u32 [#allocation7], 4
      %s45 = int_to_ptr.vmem [resolvable:$true] %s44
      %50 = dma.hbm_to_vmem [thread:$0]  %s43, 256, %s45, [#allocation6], 64, 64, 4
    $region13: #{tpu_custom_call.1} parent=1 // pred_fallthru
      _
    // Predicated region
    $region14: #{tpu_custom_call.1} parent=1 // pred_check
      _
    $region15: #{tpu_custom_call.1} parent=1 // pred_check_branch
      %52 = sbr.rel (0) target = $region17
    $region16: #{tpu_custom_call.1} parent=1 // pred_region
      %54 = vsyncadd [#allocation9], 0
      %s55 = sshll.u32 %s3, 4
      %s56 = int_to_ptr.hbm [resolvable:$true] %s55
      %s57 = sshll.u32 [#allocation8], 4
      %s58 = int_to_ptr.vmem [resolvable:$true] %s57
      %63 = dma.hbm_to_vmem [thread:$0]  %s56, 256, %s58, [#allocation9], 64, 64, 4
    $region17: #{tpu_custom_call.1} parent=1 // pred_fallthru
      _
    // Predicated region
    $region18: #{tpu_custom_call.1} parent=1 // pred_check
      _
    $region19: #{tpu_custom_call.1} parent=1 // pred_check_branch
      %65 = sbr.rel (0) target = $region21
    $region20: #{tpu_custom_call.1} parent=1 // pred_region
      %67 = vsyncadd [#allocation9], 0
      %s68 = sshll.u32 %s4, 4
      %s69 = int_to_ptr.hbm [resolvable:$true] %s68
      %s70 = sshll.u32 [#allocation10], 4
      %s71 = int_to_ptr.vmem [resolvable:$true] %s70
      %76 = dma.hbm_to_vmem [thread:$0]  %s69, 1024, %s71, [#allocation9], 64, 64, 4
    $region21: #{tpu_custom_call.1} parent=1 // pred_fallthru
      _
    // Predicated region
    $region22: #{tpu_custom_call.1} parent=1 // pred_check
      _
    $region23: #{tpu_custom_call.1} parent=1 // pred_check_branch
      %78 = sbr.rel (0) target = $region25
    $region24: #{tpu_custom_call.1} parent=1 // pred_region
      %80 = vsyncadd [#allocation12], 0
      %s81 = sshll.u32 %s5, 4
      %s82 = int_to_ptr.hbm [resolvable:$true] %s81
      %s83 = sshll.u32 [#allocation11], 4
      %s84 = int_to_ptr.vmem [resolvable:$true] %s83
      %89 = dma.hbm_to_vmem [thread:$0]  %s82, 1024, %s84, [#allocation12], 64, 64, 4
    $region25: #{tpu_custom_call.1} parent=1 // pred_fallthru
      _
    // Predicated region
    $region26: #{tpu_custom_call.1} parent=1 // pred_check
      _
    $region27: #{tpu_custom_call.1} parent=1 // pred_check_branch
      %91 = sbr.rel (0) target = $region29
    $region28: #{tpu_custom_call.1} parent=1 // pred_region
      %93 = dma.done [#allocation3], 128
    $region29: #{tpu_custom_call.1} parent=1 // pred_fallthru
      _
    // Predicated region
    $region30: #{tpu_custom_call.1} parent=1 // pred_check
      _
    $region31: #{tpu_custom_call.1} parent=1 // pred_check_branch
      %95 = sbr.rel (0) target = $region33
    $region32: #{tpu_custom_call.1} parent=1 // pred_region
      %97 = dma.done [#allocation6], 128
    $region33: #{tpu_custom_call.1} parent=1 // pred_fallthru
      _
    // Predicated region
    $region34: #{tpu_custom_call.1} parent=1 // pred_check
      _
    $region35: #{tpu_custom_call.1} parent=1 // pred_check_branch
      %99 = sbr.rel (0) target = $region37
    $region36: #{tpu_custom_call.1} parent=1 // pred_region
      %101 = dma.done [#allocation6], 256
    $region37: #{tpu_custom_call.1} parent=1 // pred_fallthru
      _
    // Predicated region
    $region38: #{tpu_custom_call.1} parent=1 // pred_check
      _
    $region39: #{tpu_custom_call.1} parent=1 // pred_check_branch
      %103 = sbr.rel (0) target = $region41
    $region40: #{tpu_custom_call.1} parent=1 // pred_region
      %105 = dma.done [#allocation9], 256
    $region41: #{tpu_custom_call.1} parent=1 // pred_fallthru
      _
    // Predicated region
    $region42: #{tpu_custom_call.1} parent=1 // pred_check
      _
    $region43: #{tpu_custom_call.1} parent=1 // pred_check_branch
      %107 = sbr.rel (0) target = $region45
    $region44: #{tpu_custom_call.1} parent=1 // pred_region
      %109 = dma.done [#allocation9], 1024
    $region45: #{tpu_custom_call.1} parent=1 // pred_fallthru
      _
    // Predicated region
    $region46: #{tpu_custom_call.1} parent=1 // pred_check
      _
    $region47: #{tpu_custom_call.1} parent=1 // pred_check_branch
      %111 = sbr.rel (0) target = $region49
    $region48: #{tpu_custom_call.1} parent=1 // pred_region
      %113 = dma.done [#allocation12], 1024
    $region49: #{tpu_custom_call.1} parent=1 // pred_fallthru
      _
    %v115 = vld [vmem:[#allocation2] sm:$0xff]
    %v116 = vpack.c.bf16 %v115, %v115
    %v117 = vld [vmem:[#allocation5] sm:$0xff]
    %v118 = vpack.c.bf16 %v117, %v117
    %v119 = vld [vmem:[#allocation7] sm:$0xf]
    %v120 = vld [vmem:[#allocation7 + $0x4] sm:$0xf]
    %v121 = vld [vmem:[#allocation7 + $0x8] sm:$0xf]
    %v122 = vld [vmem:[#allocation7 + $0xc] sm:$0xf]
    %v123 = vld [vmem:[#allocation8] sm:$0xf]
    %v124 = vld [vmem:[#allocation8 + $0x4] sm:$0xf]
    %v125 = vld [vmem:[#allocation8 + $0x8] sm:$0xf]
    %v126 = vld [vmem:[#allocation8 + $0xc] sm:$0xf]
    %v131 = vunpack.c.l.b16 %v123
    %v132 = vunpack.c.l.b16 %v124
    %v133 = vunpack.c.l.b16 %v125
    %v134 = vunpack.c.l.b16 %v126
    %v135 = vpack.c.b16 %v132, %v131
    %v136 = vpack.c.b16 %v134, %v133
    %vm139 = vcmask 261120
    %v141 = vsel %vm139, %v118, 0
    %143 = vmatpush.bf16.msra.mxu0 0
    %144 = vmatpush.bf16.msra.mxu0 0
    %145 = vmatpush.bf16.msra.mxu0 0
    %146 = vmatpush.bf16.msra.mxu0 0
    %147 = vmatpush.bf16.msra.mxu0 0
    %148 = vmatpush.bf16.msra.mxu0 0
    %149 = vmatpush.bf16.msra.mxu0 %v136
    %150 = vmatpush.bf16.msra.mxu0 %v135
    %151 = vmatmul.bf16.gmra.mxu0 %v141
    %v152 = vpop.f32.mrf.mxu0
    %v153 = vadd.f32 0.0, %v152
    %v154 = vpop.f32.mrf.mxu0
    %155 = vdwg.mxu0
    %v160 = vunpack.c.l.b16 %v119
    %v161 = vunpack.c.l.b16 %v120
    %v162 = vunpack.c.l.b16 %v121
    %v163 = vunpack.c.l.b16 %v122
    %v164 = vpack.c.b16 %v161, %v160
    %v165 = vpack.c.b16 %v163, %v162
    %v169 = vsel %vm139, %v116, 0
    %171 = vmatpush.bf16.msra.mxu0 0
    %172 = vmatpush.bf16.msra.mxu0 0
    %173 = vmatpush.bf16.msra.mxu0 0
    %174 = vmatpush.bf16.msra.mxu0 0
    %175 = vmatpush.bf16.msra.mxu0 0
    %176 = vmatpush.bf16.msra.mxu0 0
    %177 = vmatpush.bf16.msra.mxu0 %v165
    %178 = vmatpush.bf16.msra.mxu0 %v164
    %179 = vmatmul.bf16.gmra.mxu0 %v169
    %v180 = vpop.f32.mrf.mxu0
    %v181 = vadd.f32 %v153, %v180
    %v182 = vpop.f32.mrf.mxu0
    %183 = vdwg.mxu0
    %v184 = vmax.f32 %v181, 0.0
    %v185 = vpack.c.bf16 %v184, %v184
    %v186 = vld [vmem:[#allocation10] sm:$0xf]
    %v187 = vld [vmem:[#allocation10 + $0x4] sm:$0xf]
    %v188 = vld [vmem:[#allocation10 + $0x8] sm:$0xf]
    %v189 = vld [vmem:[#allocation10 + $0xc] sm:$0xf]
    %v190 = vld [vmem:[#allocation10 + $0x10] sm:$0xf]
    %v191 = vld [vmem:[#allocation10 + $0x14] sm:$0xf]
    %v192 = vld [vmem:[#allocation10 + $0x18] sm:$0xf]
    %v193 = vld [vmem:[#allocation10 + $0x1c] sm:$0xf]
    %v194 = vld [vmem:[#allocation10 + $0x20] sm:$0xf]
    %v195 = vld [vmem:[#allocation10 + $0x24] sm:$0xf]
    %v196 = vld [vmem:[#allocation10 + $0x28] sm:$0xf]
    %v197 = vld [vmem:[#allocation10 + $0x2c] sm:$0xf]
    %v198 = vld [vmem:[#allocation10 + $0x30] sm:$0xf]
    %v199 = vld [vmem:[#allocation10 + $0x34] sm:$0xf]
    %v200 = vld [vmem:[#allocation10 + $0x38] sm:$0xf]
    %v201 = vld [vmem:[#allocation10 + $0x3c] sm:$0xf]
    %v218 = vunpack.c.l.b16 %v186
    %v219 = vunpack.c.l.b16 %v187
    %v220 = vunpack.c.l.b16 %v188
    %v221 = vunpack.c.l.b16 %v189
    %v222 = vunpack.c.l.b16 %v190
    %v223 = vunpack.c.l.b16 %v191
    %v224 = vunpack.c.l.b16 %v192
    %v225 = vunpack.c.l.b16 %v193
    %v226 = vunpack.c.l.b16 %v194
    %v227 = vunpack.c.l.b16 %v195
    %v228 = vunpack.c.l.b16 %v196
    %v229 = vunpack.c.l.b16 %v197
    %v230 = vunpack.c.l.b16 %v198
    %v231 = vunpack.c.l.b16 %v199
    %v232 = vunpack.c.l.b16 %v200
    %v233 = vunpack.c.l.b16 %v201
    %v234 = vpack.c.b16 %v219, %v218
    %v235 = vpack.c.b16 %v221, %v220
    %v236 = vpack.c.b16 %v223, %v222
    %v237 = vpack.c.b16 %v225, %v224
    %v238 = vpack.c.b16 %v227, %v226
    %v239 = vpack.c.b16 %v229, %v228
    %v240 = vpack.c.b16 %v231, %v230
    %v241 = vpack.c.b16 %v233, %v232
    %250 = vmatpush.bf16.msra.mxu0 %v241
    %251 = vmatpush.bf16.msra.mxu0 %v240
    %252 = vmatpush.bf16.msra.mxu0 %v239
    %253 = vmatpush.bf16.msra.mxu0 %v238
    %254 = vmatpush.bf16.msra.mxu0 %v237
    %255 = vmatpush.bf16.msra.mxu0 %v236
    %256 = vmatpush.bf16.msra.mxu0 %v235
    %257 = vmatpush.bf16.msra.mxu0 %v234
    %258 = vmatmul.bf16.gmra.mxu0 %v185
    %v259 = vpop.f32.mrf.mxu0
    %v260 = vadd.f32 0.0, %v259
    %v261 = vpop.f32.mrf.mxu0
    %262 = vdwg.mxu0
    %v263 = vmax.f32 %v260, 0.0
    %v264 = vpack.c.bf16 %v263, %v263
    %v265 = vld [vmem:[#allocation11] sm:$0xf]
    %v266 = vld [vmem:[#allocation11 + $0x4] sm:$0xf]
    %v267 = vld [vmem:[#allocation11 + $0x8] sm:$0xf]
    %v268 = vld [vmem:[#allocation11 + $0xc] sm:$0xf]
    %v269 = vld [vmem:[#allocation11 + $0x10] sm:$0xf]
    %v270 = vld [vmem:[#allocation11 + $0x14] sm:$0xf]
    %v271 = vld [vmem:[#allocation11 + $0x18] sm:$0xf]
    %v272 = vld [vmem:[#allocation11 + $0x1c] sm:$0xf]
    %v273 = vld [vmem:[#allocation11 + $0x20] sm:$0xf]
    %v274 = vld [vmem:[#allocation11 + $0x24] sm:$0xf]
    %v275 = vld [vmem:[#allocation11 + $0x28] sm:$0xf]
    %v276 = vld [vmem:[#allocation11 + $0x2c] sm:$0xf]
    %v277 = vld [vmem:[#allocation11 + $0x30] sm:$0xf]
    %v278 = vld [vmem:[#allocation11 + $0x34] sm:$0xf]
    %v279 = vld [vmem:[#allocation11 + $0x38] sm:$0xf]
    %v280 = vld [vmem:[#allocation11 + $0x3c] sm:$0xf]
    %v297 = vunpack.c.l.b16 %v265
    %v298 = vunpack.c.l.b16 %v266
    %v299 = vunpack.c.l.b16 %v267
    %v300 = vunpack.c.l.b16 %v268
    %v301 = vunpack.c.l.b16 %v269
    %v302 = vunpack.c.l.b16 %v270
    %v303 = vunpack.c.l.b16 %v271
    %v304 = vunpack.c.l.b16 %v272
    %v305 = vunpack.c.l.b16 %v273
    %v306 = vunpack.c.l.b16 %v274
    %v307 = vunpack.c.l.b16 %v275
    %v308 = vunpack.c.l.b16 %v276
    %v309 = vunpack.c.l.b16 %v277
    %v310 = vunpack.c.l.b16 %v278
    %v311 = vunpack.c.l.b16 %v279
    %v312 = vunpack.c.l.b16 %v280
    %v313 = vpack.c.b16 %v298, %v297
    %v314 = vpack.c.b16 %v300, %v299
    %v315 = vpack.c.b16 %v302, %v301
    %v316 = vpack.c.b16 %v304, %v303
    %v317 = vpack.c.b16 %v306, %v305
    %v318 = vpack.c.b16 %v308, %v307
    %v319 = vpack.c.b16 %v310, %v309
    %v320 = vpack.c.b16 %v312, %v311
    %329 = vmatpush.bf16.msra.mxu0 %v320
    %330 = vmatpush.bf16.msra.mxu0 %v319
    %331 = vmatpush.bf16.msra.mxu0 %v318
    %332 = vmatpush.bf16.msra.mxu0 %v317
    %333 = vmatpush.bf16.msra.mxu0 %v316
    %334 = vmatpush.bf16.msra.mxu0 %v315
    %335 = vmatpush.bf16.msra.mxu0 %v314
    %336 = vmatpush.bf16.msra.mxu0 %v313
    %337 = vmatmul.bf16.gmra.mxu0 %v264
    %v338 = vpop.f32.mrf.mxu0
    %v339 = vadd.f32 0.0, %v338
    %v340 = vpop.f32.mrf.mxu0
    %341 = vdwg.mxu0
    %342 = vst [vmem:[#allocation13] sm:$0xff] %v339
    // Predicated region
    $region50: #{tpu_custom_call.1} parent=1 // pred_check
      _
    $region51: #{tpu_custom_call.1} parent=1 // pred_check_branch
      %344 = sbr.rel (0) target = $region53
    $region52: #{tpu_custom_call.1} parent=1 // pred_region
      %346 = vsyncadd [#allocation4], 0
      %s348 = sshll.u32 [#allocation13], 4
      %s349 = int_to_ptr.vmem [resolvable:$true] %s348
      %s350 = sshll.u32 %s6, 4
      %s351 = int_to_ptr.hbm [resolvable:$true] %s350
      %353 = dma.vmem_to_hbm [thread:$0]  %s349, 128, %s351, [#allocation4]
    $region53: #{tpu_custom_call.1} parent=1 // pred_fallthru
      _
    // Predicated region
    $region54: #{tpu_custom_call.1} parent=1 // pred_check
      _
    $region55: #{tpu_custom_call.1} parent=1 // pred_check_branch
      %355 = sbr.rel (0) target = $region57
    $region56: #{tpu_custom_call.1} parent=1 // pred_region
      %357 = dma.done [#allocation4], 128
    $region57: #{tpu_custom_call.1} parent=1 // pred_fallthru
      _
    %358 = vsyncpa [#allocation3], 1
    %359 = vsyncpa [#allocation6], 1
    %360 = vsyncpa [#allocation9], 1
    %361 = vsyncpa [#allocation12], 1
    %362 = vsyncpa [#allocation4], 1

</llo_original>
